<compile_context>
chip_gen: v7x
topology: tpu7x:2x2x1
jax: 0.10.0
libtpu: 0.0.40
codegen_flags: <defaults>
</compile_context>

<pallas_src>
import jax
import jax.numpy as jnp
from jax import lax
from jax.experimental import pallas as pl
from jax.experimental.pallas import tpu as pltpu


# ----------------------------------------------------------------------------
# Fused kernel: Linear -> ReLU -> BatchNorm1d (training-mode batch stats).
# One grid point per Cout stripe; the full batch is resident for BN stats.
# ----------------------------------------------------------------------------
def nonlinear_kernel(x_ref, w_ref, b_ref, gamma_ref, beta_ref, o_ref):
    # Linear: bf16 operands on the MXU, f32 accumulation.  x is (N, Cin),
    # w is the pre-transposed (Cin, tile_Cout) stripe (no in-kernel transpose).
    y = jnp.dot(x_ref[...], w_ref[...], preferred_element_type=jnp.float32)
    # Bias + ReLU in f32.
    y = jnp.maximum(y + b_ref[...], 0.0)

    # BatchNorm1d, training mode, biased batch statistics (per feature).
    #   sweep 1: per-feature mean
    #   sweep 2: centered variance (two-pass form -> numerically stable)
    #   sweep 3: single FMA  y * scale + shift  -> one dense lane-full store
    n = y.shape[0]
    inv_n = 1.0 / n
    mean = jnp.sum(y, axis=0, keepdims=True) * inv_n                # (1, tC)
    var = jnp.sum(jnp.square(y - mean), axis=0, keepdims=True) * inv_n
    scale = gamma_ref[...] * lax.rsqrt(var + 1e-5)                  # EUP rsqrt
    shift = beta_ref[...] - mean * scale
    o_ref[...] = (y * scale + shift).astype(o_ref.dtype)


def _pick_tile_cout(cout):
    # Prefer 256-wide stripes (v6e/v7x 256x256 MXU), then 128 (v5e 128x128),
    # else fall back to the full (possibly lane-sparse) Cout for tiny models.
    for t in (256, 128):
        if cout % t == 0:
            return t
    return cout


def nonlinear_forward(x, w_t, b, gamma, beta):
    """Fused Linear -> ReLU -> BatchNorm1d (training-mode batch stats).

    x:   (N, Cin)  float32
    w_t: (Cin, Cout) float32  (== W.T, pre-transposed outside the kernel)
    b, gamma, beta: (1, Cout) float32
    """
    N, Cin = x.shape
    Cout = w_t.shape[1]
    tile_cout = _pick_tile_cout(Cout)
    grid = (Cout // tile_cout,)

    # bf16 MXU operands: native MXU dtype and half the HBM bytes for the
    # activation / weight DMAs.  BN/ReLU math stays f32 inside the kernel.
    x_bf = x.astype(jnp.bfloat16)
    w_bf = w_t.astype(jnp.bfloat16)

    cost = pl.CostEstimate(
        flops=2 * N * Cin * Cout,
        transcendentals=Cout,  # one rsqrt per feature
        bytes_accessed=(x_bf.size * x_bf.dtype.itemsize * grid[0]
                        + w_bf.size * w_bf.dtype.itemsize
                        + 3 * Cout * 4
                        + N * Cout * 4),
    )

    # TODO(synk): for very large N (full batch not VMEM-resident, esp. on
    # v7x's 64 MiB VMEM) restructure BN as a two-sweep accumulator over an
    # "arbitrary" N grid axis (sum / sumsq scratch + finalize sweep).
    return pl.pallas_call(
        nonlinear_kernel,
        out_shape=jax.ShapeDtypeStruct((N, Cout), jnp.float32),
        grid=grid,
        in_specs=[
            pl.BlockSpec((N, Cin), lambda j: (0, 0)),           # x: full batch
            pl.BlockSpec((Cin, tile_cout), lambda j: (0, j)),   # W.T stripe
            pl.BlockSpec((1, tile_cout), lambda j: (0, j)),     # bias
            pl.BlockSpec((1, tile_cout), lambda j: (0, j)),     # gamma
            pl.BlockSpec((1, tile_cout), lambda j: (0, j)),     # beta
        ],
        out_specs=pl.BlockSpec((N, tile_cout), lambda j: (0, j)),
        compiler_params=pltpu.CompilerParams(
            # Feature stripes are independent -> shard across v7x's 2 TCs.
            dimension_semantics=("parallel",),
        ),
        cost_estimate=cost,
    )(x_bf, w_bf, b, gamma, beta)


# ----------------------------------------------------------------------------
# Pure-JAX reference (same bf16-operand matmul, f32 BN) for correctness check
# ----------------------------------------------------------------------------
def nonlinear_reference(x, w_t, b, gamma, beta):
    y = jnp.dot(x.astype(jnp.bfloat16), w_t.astype(jnp.bfloat16),
                preferred_element_type=jnp.float32) + b
    y = jnp.maximum(y, 0.0)
    mean = y.mean(0, keepdims=True)
    var = jnp.square(y - mean).mean(0, keepdims=True)    # biased variance
    return (y - mean) * lax.rsqrt(var + 1e-5) * gamma + beta


# ----------------------------------------------------------------------------
# Deterministic parameters (PyTorch-style uniform init for the Linear layer)
# ----------------------------------------------------------------------------
def make_params(key, input_channels, output_channels):
    Cin, Cout = input_channels, output_channels
    k = 1.0 / jnp.sqrt(jnp.float32(Cin))
    kw, kb, kg, kbt = jax.random.split(key, 4)
    w_t = jax.random.uniform(kw, (Cin, Cout), jnp.float32, -k, k)   # == W.T
    b = jax.random.uniform(kb, (1, Cout), jnp.float32, -k, k)
    # Fresh BatchNorm1d has gamma=1, beta=0; perturb slightly so the affine
    # path is actually exercised (same forward formula).
    gamma = 1.0 + 0.1 * jax.random.normal(kg, (1, Cout), jnp.float32)
    beta = 0.1 * jax.random.normal(kbt, (1, Cout), jnp.float32)
    return w_t, b, gamma, beta


if __name__ == "__main__":
    # Small but lane/MXU-friendly shapes: batch 128, Cin 64, Cout 512
    # -> tile_Cout = 256, grid = (2,), dense 256-wide output stores.
    BATCH, IN_C, OUT_C = 128, 64, 512

    key = jax.random.PRNGKey(0)
    kx, kp = jax.random.split(key)
    x = jax.random.normal(kx, (BATCH, IN_C), jnp.float32)
    w_t, b, gamma, beta = make_params(kp, IN_C, OUT_C)

    out = jax.block_until_ready(nonlinear_forward(x, w_t, b, gamma, beta))

    ref = nonlinear_reference(x, w_t, b, gamma, beta)
    assert out.shape == (BATCH, OUT_C), out.shape
    assert jnp.allclose(out, ref, rtol=1e-3, atol=1e-3), \
        float(jnp.max(jnp.abs(out - ref)))

    # TODO(synk): BatchNorm1d's running_mean/running_var buffer updates (a
    # training-time side effect) are not materialized; the forward output uses
    # batch statistics exactly as PyTorch's training-mode forward does.
    print("KERNEL_OK")
</pallas_src>

<mosaic_0001>
module attributes {stable_mosaic.version = 11 : i64} {
  func.func @nonlinear_kernel(%arg0: i32, %arg1: memref<128x64xbf16, #tpu.memory_space<vmem>>, %arg2: memref<64x256xbf16, #tpu.memory_space<vmem>>, %arg3: memref<1x256xf32, #tpu.memory_space<vmem>>, %arg4: memref<1x256xf32, #tpu.memory_space<vmem>>, %arg5: memref<1x256xf32, #tpu.memory_space<vmem>>, %arg6: memref<128x256xf32, #tpu.memory_space<vmem>>) attributes {dimension_semantics = [#tpu.dimension_semantics<parallel>], iteration_bounds = array<i64: 2>, scalar_prefetch = 0 : i64, scratch_operands = 0 : i64, tpu.core_type = #tpu.core_type<tc>, window_params = [{pipeline_mode = #tpu.pipeline_mode<synchronous>, transform_indices = @transform_0, window_bounds = array<i64: 128, 64>}, {transform_indices = @transform_1, window_bounds = array<i64: 64, 256>}, {transform_indices = @transform_2, window_bounds = array<i64: 1, 256>}, {transform_indices = @transform_3, window_bounds = array<i64: 1, 256>}, {transform_indices = @transform_4, window_bounds = array<i64: 1, 256>}, {transform_indices = @transform_5, window_bounds = array<i64: 128, 256>}]} {
    %c0 = arith.constant 0 : index
    %c0_0 = arith.constant 0 : index
    %0 = vector.load %arg1[%c0, %c0_0] : memref<128x64xbf16, #tpu.memory_space<vmem>>, vector<128x64xbf16>
    %c0_1 = arith.constant 0 : index
    %c0_2 = arith.constant 0 : index
    %1 = vector.load %arg2[%c0_1, %c0_2] : memref<64x256xbf16, #tpu.memory_space<vmem>>, vector<64x256xbf16>
    %cst = arith.constant dense<0.000000e+00> : vector<128x256xf32>
    %2 = tpu.matmul %0, %1, %cst {dimension_numbers = #tpu.dot_dimension_numbers<[1], [0], [0], [1], [0, 0, 1, 1], [], []>} : vector<128x64xbf16>, vector<64x256xbf16>, vector<128x256xf32> -> vector<128x256xf32>
    %c0_3 = arith.constant 0 : index
    %c0_4 = arith.constant 0 : index
    %3 = vector.load %arg3[%c0_3, %c0_4] : memref<1x256xf32, #tpu.memory_space<vmem>>, vector<1x256xf32>
    %4 = vector.broadcast %3 : vector<1x256xf32> to vector<128x256xf32>
    %5 = arith.addf %2, %4 : vector<128x256xf32>
    %cst_5 = arith.constant 0.000000e+00 : f32
    %6 = vector.broadcast %cst_5 : f32 to vector<128x256xf32>
    %7 = arith.maximumf %5, %6 : vector<128x256xf32>
    %cst_6 = arith.constant dense<0.000000e+00> : vector<256xf32>
    %8 = vector.multi_reduction <add>, %7, %cst_6 [0] : vector<128x256xf32> to vector<256xf32>
    %9 = vector.shape_cast %8 : vector<256xf32> to vector<1x256xf32>
    %cst_7 = arith.constant 7.812500e-03 : f32
    %10 = vector.broadcast %cst_7 : f32 to vector<1x256xf32>
    %11 = arith.mulf %9, %10 : vector<1x256xf32>
    %12 = vector.broadcast %11 : vector<1x256xf32> to vector<128x256xf32>
    %13 = arith.subf %7, %12 : vector<128x256xf32>
    %14 = arith.mulf %13, %13 : vector<128x256xf32>
    %cst_8 = arith.constant dense<0.000000e+00> : vector<256xf32>
    %15 = vector.multi_reduction <add>, %14, %cst_8 [0] : vector<128x256xf32> to vector<256xf32>
    %16 = vector.shape_cast %15 : vector<256xf32> to vector<1x256xf32>
    %cst_9 = arith.constant 7.812500e-03 : f32
    %17 = vector.broadcast %cst_9 : f32 to vector<1x256xf32>
    %18 = arith.mulf %16, %17 : vector<1x256xf32>
    %c0_10 = arith.constant 0 : index
    %c0_11 = arith.constant 0 : index
    %19 = vector.load %arg4[%c0_10, %c0_11] : memref<1x256xf32, #tpu.memory_space<vmem>>, vector<1x256xf32>
    %cst_12 = arith.constant 9.99999974E-6 : f32
    %20 = vector.broadcast %cst_12 : f32 to vector<1x256xf32>
    %21 = arith.addf %18, %20 : vector<1x256xf32>
    %22 = math.rsqrt %21 : vector<1x256xf32>
    %23 = arith.mulf %19, %22 : vector<1x256xf32>
    %c0_13 = arith.constant 0 : index
    %c0_14 = arith.constant 0 : index
    %24 = vector.load %arg5[%c0_13, %c0_14] : memref<1x256xf32, #tpu.memory_space<vmem>>, vector<1x256xf32>
    %25 = arith.mulf %11, %23 : vector<1x256xf32>
    %26 = arith.subf %24, %25 : vector<1x256xf32>
    %27 = vector.broadcast %23 : vector<1x256xf32> to vector<128x256xf32>
    %28 = arith.mulf %7, %27 : vector<128x256xf32>
    %29 = vector.broadcast %26 : vector<1x256xf32> to vector<128x256xf32>
    %30 = arith.addf %28, %29 : vector<128x256xf32>
    %c0_15 = arith.constant 0 : index
    %c0_16 = arith.constant 0 : index
    %31 = vector.load %arg6[%c0_15, %c0_16] : memref<128x256xf32, #tpu.memory_space<vmem>>, vector<128x256xf32>
    tpu.vector_store %arg6[%c0_15, %c0_16], %30 {strides = array<i32>} : memref<128x256xf32, #tpu.memory_space<vmem>>, vector<128x256xf32>,
    return
  }
  func.func @transform_0(%arg0: i32) -> (i32, i32) {
    %c0_i32 = arith.constant 0 : i32
    %c0_i32_0 = arith.constant 0 : i32
    %c0_i32_1 = arith.constant 0 : i32
    return %c0_i32, %c0_i32_0 : i32, i32
  }
  func.func @transform_1(%arg0: i32) -> (i32, i32) {
    %c0_i32 = arith.constant 0 : i32
    %c0_i32_0 = arith.constant 0 : i32
    return %c0_i32, %arg0 : i32, i32
  }
  func.func @transform_2(%arg0: i32) -> (i32, i32) {
    %c0_i32 = arith.constant 0 : i32
    %c0_i32_0 = arith.constant 0 : i32
    return %c0_i32, %arg0 : i32, i32
  }
  func.func @transform_3(%arg0: i32) -> (i32, i32) {
    %c0_i32 = arith.constant 0 : i32
    %c0_i32_0 = arith.constant 0 : i32
    return %c0_i32, %arg0 : i32, i32
  }
  func.func @transform_4(%arg0: i32) -> (i32, i32) {
    %c0_i32 = arith.constant 0 : i32
    %c0_i32_0 = arith.constant 0 : i32
    return %c0_i32, %arg0 : i32, i32
  }
  func.func @transform_5(%arg0: i32) -> (i32, i32) {
    %c0_i32 = arith.constant 0 : i32
    %c0_i32_0 = arith.constant 0 : i32
    return %c0_i32, %arg0 : i32, i32
  }
}

</mosaic_0001>

<llo_original>
// kernel: tpu_custom_call.1
$region0: #{tpu_custom_call.1}
  #allocation0 [shape = 'u32[]', space=smem, size = 0x4, offset = 0x4, fixed_abs, tag = 'smem constant byte address 0x4 - core index']
  #allocation1 [shape = 'u32[144,128]{1,0:T(1,128)}', space=vmem, size = 0x12000, scoped, tag = 'internal scratch']
  %s0 = inlined_call_operand.vmem [shape: bf16[128,64], index: 0, kind: input, shape index: {}]
  %s1 = inlined_call_operand.hbm [shape: bf16[64,512], index: 1, kind: input, shape index: {}]
  %s2 = inlined_call_operand.vmem [shape: f32[1,512], index: 2, kind: input, shape index: {}]
  %s3 = inlined_call_operand.vmem [shape: f32[1,512], index: 3, kind: input, shape index: {}]
  %s4 = inlined_call_operand.vmem [shape: f32[1,512], index: 4, kind: input, shape index: {}]
  %s5 = inlined_call_operand.hbm [shape: f32[128,512], index: 5, kind: output, shape index: {}]
  %s6 = sld [smem:[#allocation0]]
  $region57: #{tpu_custom_call.1} parent=0
    _
  %s8 = ssub.s32 1, %s6
  %s9 = scalar_select 0, %s8, %s6
  $region1: #{tpu_custom_call.1} parent=0
    #allocation2 [shape = 'u8[65536]{0}', space=vmem, size = 0x10000, scoped, tag = 'input window, operand 1']
    #allocation3 [shape = 's32[2]{0}', space=sflag, size = 0x8, scoped, tag = 'scoped memory for tpu_custom_call.1']
    #allocation4 [shape = 's32[2]{0}', space=sflag, size = 0x8, scoped, tag = 'scoped memory for tpu_custom_call.1']
    #allocation5 [shape = 'u8[262144]{0}', space=vmem, size = 0x40000, scoped, tag = 'output window, operand 0']
    %10 = vsyncpa [#allocation3], 0
    %s11 = scalar_lea.sflag [#allocation3], 1
    %12 = vsyncpa %s11, 0
    %13 = vsyncpa [#allocation4], 0
    %s14 = scalar_lea.sflag [#allocation4], 1
    %15 = vsyncpa %s14, 0
    loop: start=0, step=1, limit=4
    $region2: #{tpu_custom_call.1} parent=1 // loop_pre_header
      _
    $region3: #{tpu_custom_call.1} parent=1 // loop_header
      %s17 = sphi 0, %s21
      %p18 = scmp.ge.s32.totalorder %s17, 4
      %s25 = sphi 0, %s25
      %s27 = sphi 0, %s25
      %s28 = sphi 0, %s27
      %s42 = sphi 0, %s28
      %s48 = sphi 0, %s50
      %s51 = sphi 0, %s48
      %s52 = sphi 0, %s51
      %s68 = sphi 0, %s52
      %s74 = sphi 0, %s76
      %s77 = sphi 0, %s74
      %s78 = sphi 0, %s77
      %s94 = sphi 0, %s78
      %s100 = sphi 0, %s102
      %s103 = sphi 0, %s100
      %s104 = sphi 0, %s103
      %s120 = sphi 0, %s104
      %s126 = sphi 0, %s128
      %s129 = sphi 0, %s126
      %s130 = sphi 0, %s129
      %s146 = sphi 0, %s130
      %s152 = sphi 0, %s154
      %s155 = sphi 0, %s152
      %s156 = sphi 0, %s155
      %s172 = sphi 0, %s156
    $region4: #{tpu_custom_call.1} parent=1 // loop_header_branch
      %20 = sbr.rel (%p18) target = $region8
    $region5: #{tpu_custom_call.1} parent=1 // loop_body
      %s22 = ssub.s32 %s17, 1
      %s23 = ssub.s32 %s17, 2
      %s24 = sadd.s32 %s17, 1
      %s26 = sadd.s32 %s25, 1
      %p29 = scmp.eq.s32.totalorder %s17, 1
      %p30 = scmp.ne.s32.totalorder %s25, %s27
      %p31 = scmp.eq.s32.totalorder %s17, 0
      %p32 = por %p30, %p31
      %p33 = scmp.ne.s32.totalorder %s25, %s27
      %p34 = scmp.eq.s32.totalorder %s22, 1
      %p35 = por %p33, %p34
      %p36 = scmp.ne.s32.totalorder %s27, %s28
      %p37 = scmp.eq.s32.totalorder %s22, 0
      %p38 = por %p36, %p37
      %p39 = scmp.ne.s32.totalorder %s27, %s28
      %p40 = scmp.eq.s32.totalorder %s23, 1
      %p41 = por %p39, %p40
      %p43 = scmp.ne.s32.totalorder %s28, %s42
      %p44 = scmp.eq.s32.totalorder %s23, 0
      %p45 = por %p43, %p44
      %s46 = ssub.s32 %s17, %s24
      %p47 = scmp.eq.s32.totalorder %s46, 0
      %s49 = sadd.s32 %s48, 1
      %s50 = scalar_select %p47, %s48, %s49
      %p53 = pneg %p47
      %p54 = scmp.eq.s32.totalorder %s17, 1
      %p55 = por %p53, %p54
      %p56 = scmp.ne.s32.totalorder %s48, %s51
      %p57 = scmp.eq.s32.totalorder %s17, 0
      %p58 = por %p56, %p57
      %p59 = scmp.ne.s32.totalorder %s48, %s51
      %p60 = scmp.eq.s32.totalorder %s22, 1
      %p61 = por %p59, %p60
      %p62 = scmp.ne.s32.totalorder %s51, %s52
      %p63 = scmp.eq.s32.totalorder %s22, 0
      %p64 = por %p62, %p63
      %p65 = scmp.ne.s32.totalorder %s51, %s52
      %p66 = scmp.eq.s32.totalorder %s23, 1
      %p67 = por %p65, %p66
      %p69 = scmp.ne.s32.totalorder %s52, %s68
      %p70 = scmp.eq.s32.totalorder %s23, 0
      %p71 = por %p69, %p70
      %s72 = ssub.s32 %s17, %s24
      %p73 = scmp.eq.s32.totalorder %s72, 0
      %s75 = sadd.s32 %s74, 1
      %s76 = scalar_select %p73, %s74, %s75
      %p79 = pneg %p73
      %p80 = scmp.eq.s32.totalorder %s17, 1
      %p81 = por %p79, %p80
      %p82 = scmp.ne.s32.totalorder %s74, %s77
      %p83 = scmp.eq.s32.totalorder %s17, 0
      %p84 = por %p82, %p83
      %p85 = scmp.ne.s32.totalorder %s74, %s77
      %p86 = scmp.eq.s32.totalorder %s22, 1
      %p87 = por %p85, %p86
      %p88 = scmp.ne.s32.totalorder %s77, %s78
      %p89 = scmp.eq.s32.totalorder %s22, 0
      %p90 = por %p88, %p89
      %p91 = scmp.ne.s32.totalorder %s77, %s78
      %p92 = scmp.eq.s32.totalorder %s23, 1
      %p93 = por %p91, %p92
      %p95 = scmp.ne.s32.totalorder %s78, %s94
      %p96 = scmp.eq.s32.totalorder %s23, 0
      %p97 = por %p95, %p96
      %s98 = ssub.s32 %s17, %s24
      %p99 = scmp.eq.s32.totalorder %s98, 0
      %s101 = sadd.s32 %s100, 1
      %s102 = scalar_select %p99, %s100, %s101
      %p105 = pneg %p99
      %p106 = scmp.eq.s32.totalorder %s17, 1
      %p107 = por %p105, %p106
      %p108 = scmp.ne.s32.totalorder %s100, %s103
      %p109 = scmp.eq.s32.totalorder %s17, 0
      %p110 = por %p108, %p109
      %p111 = scmp.ne.s32.totalorder %s100, %s103
      %p112 = scmp.eq.s32.totalorder %s22, 1
      %p113 = por %p111, %p112
      %p114 = scmp.ne.s32.totalorder %s103, %s104
      %p115 = scmp.eq.s32.totalorder %s22, 0
      %p116 = por %p114, %p115
      %p117 = scmp.ne.s32.totalorder %s103, %s104
      %p118 = scmp.eq.s32.totalorder %s23, 1
      %p119 = por %p117, %p118
      %p121 = scmp.ne.s32.totalorder %s104, %s120
      %p122 = scmp.eq.s32.totalorder %s23, 0
      %p123 = por %p121, %p122
      %s124 = ssub.s32 %s17, %s24
      %p125 = scmp.eq.s32.totalorder %s124, 0
      %s127 = sadd.s32 %s126, 1
      %s128 = scalar_select %p125, %s126, %s127
      %p131 = pneg %p125
      %p132 = scmp.eq.s32.totalorder %s17, 1
      %p133 = por %p131, %p132
      %p134 = scmp.ne.s32.totalorder %s126, %s129
      %p135 = scmp.eq.s32.totalorder %s17, 0
      %p136 = por %p134, %p135
      %p137 = scmp.ne.s32.totalorder %s126, %s129
      %p138 = scmp.eq.s32.totalorder %s22, 1
      %p139 = por %p137, %p138
      %p140 = scmp.ne.s32.totalorder %s129, %s130
      %p141 = scmp.eq.s32.totalorder %s22, 0
      %p142 = por %p140, %p141
      %p143 = scmp.ne.s32.totalorder %s129, %s130
      %p144 = scmp.eq.s32.totalorder %s23, 1
      %p145 = por %p143, %p144
      %p147 = scmp.ne.s32.totalorder %s130, %s146
      %p148 = scmp.eq.s32.totalorder %s23, 0
      %p149 = por %p147, %p148
      %s150 = ssub.s32 %s17, %s24
      %p151 = scmp.eq.s32.totalorder %s150, 0
      %s153 = sadd.s32 %s152, 1
      %s154 = scalar_select %p151, %s152, %s153
      %p157 = pneg %p151
      %p158 = scmp.eq.s32.totalorder %s17, 1
      %p159 = por %p157, %p158
      %p160 = scmp.ne.s32.totalorder %s152, %s155
      %p161 = scmp.eq.s32.totalorder %s17, 0
      %p162 = por %p160, %p161
      %p163 = scmp.ne.s32.totalorder %s152, %s155
      %p164 = scmp.eq.s32.totalorder %s22, 1
      %p165 = por %p163, %p164
      %p166 = scmp.ne.s32.totalorder %s155, %s156
      %p167 = scmp.eq.s32.totalorder %s22, 0
      %p168 = por %p166, %p167
      %p169 = scmp.ne.s32.totalorder %s155, %s156
      %p170 = scmp.eq.s32.totalorder %s23, 1
      %p171 = por %p169, %p170
      %p173 = scmp.ne.s32.totalorder %s156, %s172
      %p174 = scmp.eq.s32.totalorder %s23, 0
      %p175 = por %p173, %p174
      %p176 = scmp.le.s32.totalorder 1, %s17
      %p177 = scmp.lt.s32.totalorder %s17, 3
      %p178 = pnand %p176, %p177
      %p179 = pneg %p178
      // Predicated region
      $region9: #{tpu_custom_call.1} parent=5 // pred_check
        _
      $region10: #{tpu_custom_call.1} parent=5 // pred_check_branch
        %181 = sbr.rel (%p178) target = $region12
      $region11: #{tpu_custom_call.1} parent=5 // pred_region
        %s182 = ssub.s32 %s17, 1
        // Predicated region
        $region13: #{tpu_custom_call.1} parent=11 // pred_check
          %p183 = pneg %p38
        $region14: #{tpu_custom_call.1} parent=11 // pred_check_branch
          %185 = sbr.rel (%p183) target = $region16
        $region15: #{tpu_custom_call.1} parent=11 // pred_region
          _
        $region16: #{tpu_custom_call.1} parent=11 // pred_fallthru
          _
      $region12: #{tpu_custom_call.1} parent=5 // pred_fallthru
        _
      %p186 = scmp.lt.s32.totalorder %s17, 2
      // Predicated region
      $region17: #{tpu_custom_call.1} parent=5 // pred_check
        %p187 = pneg %p186
      $region18: #{tpu_custom_call.1} parent=5 // pred_check_branch
        %189 = sbr.rel (%p187) target = $region20
      $region19: #{tpu_custom_call.1} parent=5 // pred_region
        // Predicated region
        $region21: #{tpu_custom_call.1} parent=19 // pred_check
          %p190 = pneg %p58
        $region22: #{tpu_custom_call.1} parent=19 // pred_check_branch
          %192 = sbr.rel (%p190) target = $region24
        $region23: #{tpu_custom_call.1} parent=19 // pred_region
          %s193 = sand.u32 %s48, 1
          %s194 = scalar_lea.sflag [#allocation3], %s193
          %s195 = sand.u32 %s48, 1
          %s196 = smul.addr %s195, 64
          %s197 = scalar_lea.vmem [#allocation2], %s196
          %s198 = smul.u32 2, %s17
          %s200 = ssub.s32 1024, 1024
          %201 = vsyncadd %s194, %s200
          %s202 = smul.addr %s198, 64
          %s203 = scalar_lea.hbm %s1, %s202
          %s204 = sshll.u32 %s197, 4
          %s205 = int_to_ptr.vmem [resolvable:$true] %s204
          %210 = dma.hbm_to_vmem [thread:$0]  %s203, 1024, %s205, %s194, 256, 128, 8
        $region24: #{tpu_custom_call.1} parent=19 // pred_fallthru
          _
        // Predicated region
        $region25: #{tpu_custom_call.1} parent=19 // pred_check
          %p211 = pneg %p84
        $region26: #{tpu_custom_call.1} parent=19 // pred_check_branch
          %213 = sbr.rel (%p211) target = $region28
        $region27: #{tpu_custom_call.1} parent=19 // pred_region
          %s214 = smul.u32 2, %s17
          %p215 = scmp.lt.s32.totalorder %s214, 3
          %s216 = scalar_select %p215, %s214, 3
          %s217 = scalar_lea.vmem %s2, %s216
          %s218 = smul.u32 2, %s17
        $region28: #{tpu_custom_call.1} parent=19 // pred_fallthru
          _
        // Predicated region
        $region29: #{tpu_custom_call.1} parent=19 // pred_check
          %p219 = pneg %p110
        $region30: #{tpu_custom_call.1} parent=19 // pred_check_branch
          %221 = sbr.rel (%p219) target = $region32
        $region31: #{tpu_custom_call.1} parent=19 // pred_region
          %s222 = smul.u32 2, %s17
          %p223 = scmp.lt.s32.totalorder %s222, 3
          %s224 = scalar_select %p223, %s222, 3
          %s225 = scalar_lea.vmem %s3, %s224
          %s226 = smul.u32 2, %s17
        $region32: #{tpu_custom_call.1} parent=19 // pred_fallthru
          _
        // Predicated region
        $region33: #{tpu_custom_call.1} parent=19 // pred_check
          %p227 = pneg %p136
        $region34: #{tpu_custom_call.1} parent=19 // pred_check_branch
          %229 = sbr.rel (%p227) target = $region36
        $region35: #{tpu_custom_call.1} parent=19 // pred_region
          %s230 = smul.u32 2, %s17
          %p231 = scmp.lt.s32.totalorder %s230, 3
          %s232 = scalar_select %p231, %s230, 3
          %s233 = scalar_lea.vmem %s4, %s232
          %s234 = smul.u32 2, %s17
        $region36: #{tpu_custom_call.1} parent=19 // pred_fallthru
          _
      $region20: #{tpu_custom_call.1} parent=5 // pred_fallthru
        _
      %p235 = scmp.le.s32.totalorder 1, %s17
      %p236 = scmp.lt.s32.totalorder %s17, 3
      %p237 = pnand %p235, %p236
      %p238 = pneg %p237
      // Predicated region
      $region37: #{tpu_custom_call.1} parent=5 // pred_check
        _
      $region38: #{tpu_custom_call.1} parent=5 // pred_check_branch
        %240 = sbr.rel (%p237) target = $region40
      $region39: #{tpu_custom_call.1} parent=5 // pred_region
        %s241 = ssub.s32 %s17, 1
        %s242 = sand.u32 %s51, 1
        %s243 = scalar_lea.sflag [#allocation3], %s242
        %s244 = sand.u32 %s51, 1
        %s245 = smul.addr %s244, 64
        %s246 = scalar_lea.vmem [#allocation2], %s245
        // Predicated region
        $region41: #{tpu_custom_call.1} parent=39 // pred_check
          %p247 = pneg %p64
        $region42: #{tpu_custom_call.1} parent=39 // pred_check_branch
          %249 = sbr.rel (%p247) target = $region44
        $region43: #{tpu_custom_call.1} parent=39 // pred_region
          %250 = dma.done %s243, 1024
        $region44: #{tpu_custom_call.1} parent=39 // pred_fallthru
          _
        %p251 = pneg %p38
        %p252 = pneg %p35
        %s253 = sand.u32 %s51, 1
        %s254 = scalar_lea.sflag [#allocation3], %s253
        %s255 = sand.u32 %s51, 1
        %s256 = smul.addr %s255, 64
        %s257 = scalar_lea.vmem [#allocation2], %s256
        %p258 = pneg %p64
        %p259 = pneg %p61
        %s260 = smul.u32 2, %s22
        %p261 = scmp.lt.s32.totalorder %s260, 3
        %s262 = scalar_select %p261, %s260, 3
        %s263 = scalar_lea.vmem %s2, %s262
        %p264 = pneg %p90
        %p265 = pneg %p87
        %s266 = smul.u32 2, %s22
        %p267 = scmp.lt.s32.totalorder %s266, 3
        %s268 = scalar_select %p267, %s266, 3
        %s269 = scalar_lea.vmem %s3, %s268
        %p270 = pneg %p116
        %p271 = pneg %p113
        %s272 = smul.u32 2, %s22
        %p273 = scmp.lt.s32.totalorder %s272, 3
        %s274 = scalar_select %p273, %s272, 3
        %s275 = scalar_lea.vmem %s4, %s274
        %p276 = pneg %p142
        %p277 = pneg %p139
        %p278 = pneg %p168
        %p279 = pneg %p165
        %s280 = sand.u32 %s155, 1
        %s281 = scalar_lea.sflag [#allocation4], %s280
        %s282 = sand.u32 %s155, 1
        %s283 = smul.addr %s282, 256
        %s284 = scalar_lea.vmem [#allocation5], %s283
        %s285 = smul.u32 2, %s22
        %s286 = smul.u32 2, %s22
        %p287 = scmp.lt.s32.totalorder %s286, 3
        %s288 = scalar_select %p287, %s286, 3
        %s289 = scalar_lea.vmem %s2, %s288
        %s290 = smul.u32 2, %s22
        %s291 = smul.u32 2, %s22
        %p292 = scmp.lt.s32.totalorder %s291, 3
        %s293 = scalar_select %p292, %s291, 3
        %s294 = scalar_lea.vmem %s3, %s293
        %s295 = smul.u32 2, %s22
        %s296 = smul.u32 2, %s22
        %p297 = scmp.lt.s32.totalorder %s296, 3
        %s298 = scalar_select %p297, %s296, 3
        %s299 = scalar_lea.vmem %s4, %s298
        %s300 = smul.u32 2, %s22
        %s301 = smul.u32 2, %s22
        %v303 = vld [vmem:[%s0] sm:$0xf]
        %v304 = vld [vmem:[%s0 + $0x4] sm:$0xf]
        %v305 = vld [vmem:[%s0 + $0x8] sm:$0xf]
        %v306 = vld [vmem:[%s0 + $0xc] sm:$0xf]
        %v307 = vld [vmem:[%s0 + $0x10] sm:$0xf]
        %v308 = vld [vmem:[%s0 + $0x14] sm:$0xf]
        %v309 = vld [vmem:[%s0 + $0x18] sm:$0xf]
        %v310 = vld [vmem:[%s0 + $0x1c] sm:$0xf]
        %v311 = vld [vmem:[%s0 + $0x20] sm:$0xf]
        %v312 = vld [vmem:[%s0 + $0x24] sm:$0xf]
        %v313 = vld [vmem:[%s0 + $0x28] sm:$0xf]
        %v314 = vld [vmem:[%s0 + $0x2c] sm:$0xf]
        %v315 = vld [vmem:[%s0 + $0x30] sm:$0xf]
        %v316 = vld [vmem:[%s0 + $0x34] sm:$0xf]
        %v317 = vld [vmem:[%s0 + $0x38] sm:$0xf]
        %v318 = vld [vmem:[%s0 + $0x3c] sm:$0xf]
        %v319 = vld [vmem:[%s246] sm:$0xff]
        %v320 = vld [vmem:[%s246 + $0x8] sm:$0xff]
        %v321 = vld [vmem:[%s246 + $0x10] sm:$0xff]
        %v322 = vld [vmem:[%s246 + $0x18] sm:$0xff]
        %v323 = vld [vmem:[%s246 + $0x20] sm:$0xff]
        %v324 = vld [vmem:[%s246 + $0x28] sm:$0xff]
        %v325 = vld [vmem:[%s246 + $0x30] sm:$0xff]
        %v326 = vld [vmem:[%s246 + $0x38] sm:$0xff]
        %v327 = vld [vmem:[%s289] sm:$0x3]
        %v329 = vlaneseq
        %v330 = vshrl.u32 %v329, 7
        %v331 = vsub.s32 0, %v330
        %v332 = vrot.slane %v327, %v331
        %v333 = vlaneseq
        %v334 = vshrl.u32 %v333, 7
        %v335 = vsub.s32 1, %v334
        %v336 = vrot.slane %v327, %v335
        %v355 = vunpack.c.l.b16 %v303
        %v356 = vunpack.c.l.b16 %v304
        %v357 = vunpack.c.l.b16 %v305
        %v358 = vunpack.c.l.b16 %v306
        %v359 = vunpack.c.l.b16 %v307
        %v360 = vunpack.c.l.b16 %v308
        %v361 = vunpack.c.l.b16 %v309
        %v362 = vunpack.c.l.b16 %v310
        %v363 = vunpack.c.l.b16 %v311
        %v364 = vunpack.c.l.b16 %v312
        %v365 = vunpack.c.l.b16 %v313
        %v366 = vunpack.c.l.b16 %v314
        %v367 = vunpack.c.l.b16 %v315
        %v368 = vunpack.c.l.b16 %v316
        %v369 = vunpack.c.l.b16 %v317
        %v370 = vunpack.c.l.b16 %v318
        %v371 = vpack.c.b16 %v356, %v355
        %v372 = vpack.c.b16 %v358, %v357
        %v373 = vpack.c.b16 %v360, %v359
        %v374 = vpack.c.b16 %v362, %v361
        %v375 = vpack.c.b16 %v364, %v363
        %v376 = vpack.c.b16 %v366, %v365
        %v377 = vpack.c.b16 %v368, %v367
        %v378 = vpack.c.b16 %v370, %v369
        %v387 = vunpack.c.l.b16 %v319
        %v388 = vunpack.c.h.b16 %v319
        %v389 = vunpack.c.l.b16 %v320
        %v390 = vunpack.c.h.b16 %v320
        %v391 = vunpack.c.l.b16 %v321
        %v392 = vunpack.c.h.b16 %v321
        %v393 = vunpack.c.l.b16 %v322
        %v394 = vunpack.c.h.b16 %v322
        %v395 = vunpack.c.l.b16 %v323
        %v396 = vunpack.c.h.b16 %v323
        %v397 = vunpack.c.l.b16 %v324
        %v398 = vunpack.c.h.b16 %v324
        %v399 = vunpack.c.l.b16 %v325
        %v400 = vunpack.c.h.b16 %v325
        %v401 = vunpack.c.l.b16 %v326
        %v402 = vunpack.c.h.b16 %v326
        %v403 = vpack.c.b16 %v389, %v387
        %v404 = vpack.c.b16 %v390, %v388
        %v405 = vpack.c.b16 %v393, %v391
        %v406 = vpack.c.b16 %v394, %v392
        %v407 = vpack.c.b16 %v397, %v395
        %v408 = vpack.c.b16 %v398, %v396
        %v409 = vpack.c.b16 %v401, %v399
        %v410 = vpack.c.b16 %v402, %v400
        %vm419 = vcmask 523264
        %v421 = vsel %vm419, %v371, 0
        %v424 = vsel %vm419, %v372, 0
        %v427 = vsel %vm419, %v373, 0
        %v430 = vsel %vm419, %v374, 0
        %v433 = vsel %vm419, %v375, 0
        %v436 = vsel %vm419, %v376, 0
        %v439 = vsel %vm419, %v377, 0
        %v442 = vsel %vm419, %v378, 0
        %444 = vmatprep.subr.bf16.mxu0 %v404
        %445 = vmatpush1.bf16.msra.mxu0 %v403
        %446 = vmatprep.subr.bf16.mxu0 %v406
        %447 = vmatpush1.bf16.msra.mxu0 %v405
        %448 = vmatprep.subr.bf16.mxu0 %v408
        %449 = vmatpush1.bf16.msra.mxu0 %v407
        %450 = vmatprep.subr.bf16.mxu0 %v410
        %451 = vmatpush1.bf16.msra.mxu0 %v409
        %452 = vmatprep.subr.bf16.mxu0 0
        %453 = vmatpush1.bf16.msra.mxu0 0
        %454 = vmatprep.subr.bf16.mxu0 0
        %455 = vmatpush1.bf16.msra.mxu0 0
        %456 = vmatprep.subr.bf16.mxu0 0
        %457 = vmatpush1.bf16.msra.mxu0 0
        %458 = vmatprep.subr.bf16.mxu0 0
        %459 = vmatpush1.bf16.msra.mxu0 0
        %460 = vmatprep.subr.bf16.mxu0 0
        %461 = vmatpush1.bf16.msra.mxu0 0
        %462 = vmatprep.subr.bf16.mxu0 0
        %463 = vmatpush1.bf16.msra.mxu0 0
        %464 = vmatprep.subr.bf16.mxu0 0
        %465 = vmatpush1.bf16.msra.mxu0 0
        %466 = vmatprep.subr.bf16.mxu0 0
        %467 = vmatpush1.bf16.msra.mxu0 0
        %468 = vmatprep.subr.bf16.mxu0 0
        %469 = vmatpush1.bf16.msra.mxu0 0
        %470 = vmatprep.subr.bf16.mxu0 0
        %471 = vmatpush1.bf16.msra.mxu0 0
        %472 = vmatprep.subr.bf16.mxu0 0
        %473 = vmatpush1.bf16.msra.mxu0 0
        %474 = vmatprep.subr.bf16.mxu0 0
        %475 = vmatpush1.bf16.msra.mxu0 0
        %476 = vmatprep.mubr.bf16.mxu0 0
        %477 = vmatmul.mubr.bf16.gmra.mrb[0].mxu0 %v421
        %v478 = vpop.f32.mrb[0].mxu0
        %v479 = vadd.f32 %v332, %v478
        %v480 = vpop.f32.mrb[0].mxu0
        %v481 = vadd.f32 %v336, %v480
        %v482 = vpop.f32.mrb[0].mxu0
        %v483 = vadd.f32 %v332, %v482
        %v484 = vpop.f32.mrb[0].mxu0
        %v485 = vadd.f32 %v336, %v484
        %486 = vmatprep.mubr.bf16.mxu0 0
        %487 = vmatmul.mubr.bf16.gmra.mrb[0].mxu0 %v424
        %v488 = vpop.f32.mrb[0].mxu0
        %v489 = vadd.f32 %v332, %v488
        %v490 = vpop.f32.mrb[0].mxu0
        %v491 = vadd.f32 %v336, %v490
        %v492 = vpop.f32.mrb[0].mxu0
        %v493 = vadd.f32 %v332, %v492
        %v494 = vpop.f32.mrb[0].mxu0
        %v495 = vadd.f32 %v336, %v494
        %496 = vmatprep.mubr.bf16.mxu0 0
        %497 = vmatmul.mubr.bf16.gmra.mrb[0].mxu0 %v427
        %v498 = vpop.f32.mrb[0].mxu0
        %v499 = vadd.f32 %v332, %v498
        %v500 = vpop.f32.mrb[0].mxu0
        %v501 = vadd.f32 %v336, %v500
        %v502 = vpop.f32.mrb[0].mxu0
        %v503 = vadd.f32 %v332, %v502
        %v504 = vpop.f32.mrb[0].mxu0
        %v505 = vadd.f32 %v336, %v504
        %506 = vmatprep.mubr.bf16.mxu0 0
        %507 = vmatmul.mubr.bf16.gmra.mrb[0].mxu0 %v430
        %v508 = vpop.f32.mrb[0].mxu0
        %v509 = vadd.f32 %v332, %v508
        %v510 = vpop.f32.mrb[0].mxu0
        %v511 = vadd.f32 %v336, %v510
        %v512 = vpop.f32.mrb[0].mxu0
        %v513 = vadd.f32 %v332, %v512
        %v514 = vpop.f32.mrb[0].mxu0
        %v515 = vadd.f32 %v336, %v514
        %516 = vmatprep.mubr.bf16.mxu0 0
        %517 = vmatmul.mubr.bf16.gmra.mrb[0].mxu0 %v433
        %v518 = vpop.f32.mrb[0].mxu0
        %v519 = vadd.f32 %v332, %v518
        %v520 = vpop.f32.mrb[0].mxu0
        %v521 = vadd.f32 %v336, %v520
        %v522 = vpop.f32.mrb[0].mxu0
        %v523 = vadd.f32 %v332, %v522
        %v524 = vpop.f32.mrb[0].mxu0
        %v525 = vadd.f32 %v336, %v524
        %526 = vmatprep.mubr.bf16.mxu0 0
        %527 = vmatmul.mubr.bf16.gmra.mrb[0].mxu0 %v436
        %v528 = vpop.f32.mrb[0].mxu0
        %v529 = vadd.f32 %v332, %v528
        %v530 = vpop.f32.mrb[0].mxu0
        %v531 = vadd.f32 %v336, %v530
        %v532 = vpop.f32.mrb[0].mxu0
        %v533 = vadd.f32 %v332, %v532
        %v534 = vpop.f32.mrb[0].mxu0
        %v535 = vadd.f32 %v336, %v534
        %536 = vmatprep.mubr.bf16.mxu0 0
        %537 = vmatmul.mubr.bf16.gmra.mrb[0].mxu0 %v439
        %v538 = vpop.f32.mrb[0].mxu0
        %v539 = vadd.f32 %v332, %v538
        %v540 = vpop.f32.mrb[0].mxu0
        %v541 = vadd.f32 %v336, %v540
        %v542 = vpop.f32.mrb[0].mxu0
        %v543 = vadd.f32 %v332, %v542
        %v544 = vpop.f32.mrb[0].mxu0
        %v545 = vadd.f32 %v336, %v544
        %546 = vmatprep.mubr.bf16.mxu0 0
        %547 = vmatmul.mubr.bf16.gmra.mrb[0].mxu0 %v442
        %v548 = vpop.f32.mrb[0].mxu0
        %v549 = vadd.f32 %v332, %v548
        %v550 = vpop.f32.mrb[0].mxu0
        %v551 = vadd.f32 %v336, %v550
        %v552 = vpop.f32.mrb[0].mxu0
        %v553 = vadd.f32 %v332, %v552
        %v554 = vpop.f32.mrb[0].mxu0
        %v555 = vadd.f32 %v336, %v554
        %556 = vdwg.mxu0
        %v557 = vmax.f32 %v479, 0.0
        %v558 = vmax.f32 %v481, 0.0
        %v559 = vmax.f32 %v483, 0.0
        %v560 = vmax.f32 %v485, 0.0
        %v561 = vmax.f32 %v489, 0.0
        %v562 = vmax.f32 %v491, 0.0
        %v563 = vmax.f32 %v493, 0.0
        %v564 = vmax.f32 %v495, 0.0
        %v565 = vmax.f32 %v499, 0.0
        %v566 = vmax.f32 %v501, 0.0
        %v567 = vmax.f32 %v503, 0.0
        %v568 = vmax.f32 %v505, 0.0
        %v569 = vmax.f32 %v509, 0.0
        %v570 = vmax.f32 %v511, 0.0
        %v571 = vmax.f32 %v513, 0.0
        %v572 = vmax.f32 %v515, 0.0
        %v573 = vmax.f32 %v519, 0.0
        %v574 = vmax.f32 %v521, 0.0
        %v575 = vmax.f32 %v523, 0.0
        %v576 = vmax.f32 %v525, 0.0
        %v577 = vmax.f32 %v529, 0.0
        %v578 = vmax.f32 %v531, 0.0
        %v579 = vmax.f32 %v533, 0.0
        %v580 = vmax.f32 %v535, 0.0
        %v581 = vmax.f32 %v539, 0.0
        %v582 = vmax.f32 %v541, 0.0
        %v583 = vmax.f32 %v543, 0.0
        %v584 = vmax.f32 %v545, 0.0
        %v585 = vmax.f32 %v549, 0.0
        %v586 = vmax.f32 %v551, 0.0
        %v587 = vmax.f32 %v553, 0.0
        %v588 = vmax.f32 %v555, 0.0
        %v589 = vadd.f32 %v557, %v559
        %v590 = vadd.f32 %v589, %v561
        %v591 = vadd.f32 %v590, %v563
        %v592 = vadd.f32 %v591, %v565
        %v593 = vadd.f32 %v592, %v567
        %v594 = vadd.f32 %v593, %v569
        %v595 = vadd.f32 %v594, %v571
        %v596 = vadd.f32 %v595, %v573
        %v597 = vadd.f32 %v596, %v575
        %v598 = vadd.f32 %v597, %v577
        %v599 = vadd.f32 %v598, %v579
        %v600 = vadd.f32 %v599, %v581
        %v601 = vadd.f32 %v600, %v583
        %v602 = vadd.f32 %v601, %v585
        %v603 = vadd.f32 %v602, %v587
        %v604 = vrot.slane %v603, 4
        %v605 = vadd.f32 %v603, %v604
        %v606 = vrot.slane %v605, 2
        %v607 = vadd.f32 %v605, %v606
        %v608 = vrot.slane %v607, 1
        %v609 = vadd.f32 %v607, %v608
        %v610 = vadd.f32 %v558, %v560
        %v611 = vadd.f32 %v610, %v562
        %v612 = vadd.f32 %v611, %v564
        %v613 = vadd.f32 %v612, %v566
        %v614 = vadd.f32 %v613, %v568
        %v615 = vadd.f32 %v614, %v570
        %v616 = vadd.f32 %v615, %v572
        %v617 = vadd.f32 %v616, %v574
        %v618 = vadd.f32 %v617, %v576
        %v619 = vadd.f32 %v618, %v578
        %v620 = vadd.f32 %v619, %v580
        %v621 = vadd.f32 %v620, %v582
        %v622 = vadd.f32 %v621, %v584
        %v623 = vadd.f32 %v622, %v586
        %v624 = vadd.f32 %v623, %v588
        %v625 = vrot.slane %v624, 4
        %v626 = vadd.f32 %v624, %v625
        %v627 = vrot.slane %v626, 2
        %v628 = vadd.f32 %v626, %v627
        %v629 = vrot.slane %v628, 1
        %v630 = vadd.f32 %v628, %v629
        %v631 = vmul.f32 %v609, 0.0078125
        %v632 = vmul.f32 %v630, 0.0078125
        %v633 = vsub.f32 %v557, %v631
        %v634 = vsub.f32 %v558, %v632
        %v635 = vsub.f32 %v559, %v631
        %v636 = vsub.f32 %v560, %v632
        %v637 = vsub.f32 %v561, %v631
        %v638 = vsub.f32 %v562, %v632
        %v639 = vsub.f32 %v563, %v631
        %v640 = vsub.f32 %v564, %v632
        %v641 = vsub.f32 %v565, %v631
        %v642 = vsub.f32 %v566, %v632
        %v643 = vsub.f32 %v567, %v631
        %v644 = vsub.f32 %v568, %v632
        %v645 = vsub.f32 %v569, %v631
        %v646 = vsub.f32 %v570, %v632
        %v647 = vsub.f32 %v571, %v631
        %v648 = vsub.f32 %v572, %v632
        %v649 = vsub.f32 %v573, %v631
        %v650 = vsub.f32 %v574, %v632
        %v651 = vsub.f32 %v575, %v631
        %v652 = vsub.f32 %v576, %v632
        %v653 = vsub.f32 %v577, %v631
        %v654 = vsub.f32 %v578, %v632
        %v655 = vsub.f32 %v579, %v631
        %v656 = vsub.f32 %v580, %v632
        %v657 = vsub.f32 %v581, %v631
        %v658 = vsub.f32 %v582, %v632
        %v659 = vsub.f32 %v583, %v631
        %v660 = vsub.f32 %v584, %v632
        %v661 = vsub.f32 %v585, %v631
        %v662 = vsub.f32 %v586, %v632
        %v663 = vsub.f32 %v587, %v631
        %v664 = vsub.f32 %v588, %v632
        %v665 = vmul.f32 %v633, %v633
        %v666 = vmul.f32 %v634, %v634
        %v667 = vmul.f32 %v635, %v635
        %v668 = vmul.f32 %v636, %v636
        %v669 = vmul.f32 %v637, %v637
        %v670 = vmul.f32 %v638, %v638
        %v671 = vmul.f32 %v639, %v639
        %v672 = vmul.f32 %v640, %v640
        %v673 = vmul.f32 %v641, %v641
        %v674 = vmul.f32 %v642, %v642
        %v675 = vmul.f32 %v643, %v643
        %v676 = vmul.f32 %v644, %v644
        %v677 = vmul.f32 %v645, %v645
        %v678 = vmul.f32 %v646, %v646
        %v679 = vmul.f32 %v647, %v647
        %v680 = vmul.f32 %v648, %v648
        %v681 = vmul.f32 %v649, %v649
        %v682 = vmul.f32 %v650, %v650
        %v683 = vmul.f32 %v651, %v651
        %v684 = vmul.f32 %v652, %v652
        %v685 = vmul.f32 %v653, %v653
        %v686 = vmul.f32 %v654, %v654
        %v687 = vmul.f32 %v655, %v655
        %v688 = vmul.f32 %v656, %v656
        %v689 = vmul.f32 %v657, %v657
        %v690 = vmul.f32 %v658, %v658
        %v691 = vmul.f32 %v659, %v659
        %v692 = vmul.f32 %v660, %v660
        %v693 = vmul.f32 %v661, %v661
        %v694 = vmul.f32 %v662, %v662
        %v695 = vmul.f32 %v663, %v663
        %v696 = vmul.f32 %v664, %v664
        %v697 = vadd.f32 %v665, %v667
        %v698 = vadd.f32 %v697, %v669
        %v699 = vadd.f32 %v698, %v671
        %v700 = vadd.f32 %v699, %v673
        %v701 = vadd.f32 %v700, %v675
        %v702 = vadd.f32 %v701, %v677
        %v703 = vadd.f32 %v702, %v679
        %v704 = vadd.f32 %v703, %v681
        %v705 = vadd.f32 %v704, %v683
        %v706 = vadd.f32 %v705, %v685
        %v707 = vadd.f32 %v706, %v687
        %v708 = vadd.f32 %v707, %v689
        %v709 = vadd.f32 %v708, %v691
        %v710 = vadd.f32 %v709, %v693
        %v711 = vadd.f32 %v710, %v695
        %v712 = vrot.slane %v711, 4
        %v713 = vadd.f32 %v711, %v712
        %v714 = vrot.slane %v713, 2
        %v715 = vadd.f32 %v713, %v714
        %v716 = vrot.slane %v715, 1
        %v717 = vadd.f32 %v715, %v716
        %v718 = vadd.f32 %v666, %v668
        %v719 = vadd.f32 %v718, %v670
        %v720 = vadd.f32 %v719, %v672
        %v721 = vadd.f32 %v720, %v674
        %v722 = vadd.f32 %v721, %v676
        %v723 = vadd.f32 %v722, %v678
        %v724 = vadd.f32 %v723, %v680
        %v725 = vadd.f32 %v724, %v682
        %v726 = vadd.f32 %v725, %v684
        %v727 = vadd.f32 %v726, %v686
        %v728 = vadd.f32 %v727, %v688
        %v729 = vadd.f32 %v728, %v690
        %v730 = vadd.f32 %v729, %v692
        %v731 = vadd.f32 %v730, %v694
        %v732 = vadd.f32 %v731, %v696
        %v733 = vrot.slane %v732, 4
        %v734 = vadd.f32 %v732, %v733
        %v735 = vrot.slane %v734, 2
        %v736 = vadd.f32 %v734, %v735
        %v737 = vrot.slane %v736, 1
        %v738 = vadd.f32 %v736, %v737
        %v739 = vmul.f32 %v717, 0.0078125
        %v740 = vmul.f32 %v738, 0.0078125
        %v741 = vld [vmem:[%s294] sm:$0x3]
        %v742 = vadd.f32 %v739, 1e-05
        %v743 = vadd.f32 %v740, 1e-05
        %v744 = vrsqrt.pop %v742
        %v745 = vrsqrt.pop %v743
        %v748 = vcombine.low %v744, %v745
        %v750 = vunpack.c.l.s4 1966171168
        %v751 = vunpack.c.0.s8 %v750
        %v752 = vlaneseq
        %v753 = vshrl.u32 %v752, 7
        %v754 = vsub.s32 %v751, %v753
        %v755 = vrot.slane %v748, %v754
        %v757 = vunpack.c.l.s4 1966171168
        %v758 = vunpack.c.0.s8 %v757
        %v759 = vlaneseq
        %v760 = vshrl.u32 %v759, 7
        %v761 = vsub.s32 %v758, %v760
        %v762 = vrot.slane %v755, %v761
        %v764 = vmul.f32 %v741, %v762
        %v765 = vld [vmem:[%s299] sm:$0x3]
        %v767 = vlaneseq
        %v768 = vshrl.u32 %v767, 7
        %v769 = vsub.s32 0, %v768
        %v770 = vrot.slane %v764, %v769
        %v771 = vlaneseq
        %v772 = vshrl.u32 %v771, 7
        %v773 = vsub.s32 1, %v772
        %v774 = vrot.slane %v764, %v773
        %v777 = vmul.f32 %v631, %v770
        %v778 = vmul.f32 %v632, %v774
        %v781 = vcombine.low %v777, %v778
        %v783 = vunpack.c.l.s4 1966171168
        %v784 = vunpack.c.0.s8 %v783
        %v785 = vlaneseq
        %v786 = vshrl.u32 %v785, 7
        %v787 = vsub.s32 %v784, %v786
        %v788 = vrot.slane %v781, %v787
        %v790 = vunpack.c.l.s4 1966171168
        %v791 = vunpack.c.0.s8 %v790
        %v792 = vlaneseq
        %v793 = vshrl.u32 %v792, 7
        %v794 = vsub.s32 %v791, %v793
        %v795 = vrot.slane %v788, %v794
        %v797 = vsub.f32 %v765, %v795
        %v798 = vmul.f32 %v557, %v770
        %v799 = vmul.f32 %v558, %v774
        %v800 = vmul.f32 %v559, %v770
        %v801 = vmul.f32 %v560, %v774
        %v802 = vmul.f32 %v561, %v770
        %v803 = vmul.f32 %v562, %v774
        %v804 = vmul.f32 %v563, %v770
        %v805 = vmul.f32 %v564, %v774
        %v806 = vmul.f32 %v565, %v770
        %v807 = vmul.f32 %v566, %v774
        %v808 = vmul.f32 %v567, %v770
        %v809 = vmul.f32 %v568, %v774
        %v810 = vmul.f32 %v569, %v770
        %v811 = vmul.f32 %v570, %v774
        %v812 = vmul.f32 %v571, %v770
        %v813 = vmul.f32 %v572, %v774
        %v814 = vmul.f32 %v573, %v770
        %v815 = vmul.f32 %v574, %v774
        %v816 = vmul.f32 %v575, %v770
        %v817 = vmul.f32 %v576, %v774
        %v818 = vmul.f32 %v577, %v770
        %v819 = vmul.f32 %v578, %v774
        %v820 = vmul.f32 %v579, %v770
        %v821 = vmul.f32 %v580, %v774
        %v822 = vmul.f32 %v581, %v770
        %v823 = vmul.f32 %v582, %v774
        %v824 = vmul.f32 %v583, %v770
        %v825 = vmul.f32 %v584, %v774
        %v826 = vmul.f32 %v585, %v770
        %v827 = vmul.f32 %v586, %v774
        %v828 = vmul.f32 %v587, %v770
        %v829 = vmul.f32 %v588, %v774
        %v831 = vlaneseq
        %v832 = vshrl.u32 %v831, 7
        %v833 = vsub.s32 0, %v832
        %v834 = vrot.slane %v797, %v833
        %v835 = vlaneseq
        %v836 = vshrl.u32 %v835, 7
        %v837 = vsub.s32 1, %v836
        %v838 = vrot.slane %v797, %v837
        %v841 = vadd.f32 %v798, %v834
        %v842 = vadd.f32 %v799, %v838
        %v843 = vadd.f32 %v800, %v834
        %v844 = vadd.f32 %v801, %v838
        %v845 = vadd.f32 %v802, %v834
        %v846 = vadd.f32 %v803, %v838
        %v847 = vadd.f32 %v804, %v834
        %v848 = vadd.f32 %v805, %v838
        %v849 = vadd.f32 %v806, %v834
        %v850 = vadd.f32 %v807, %v838
        %v851 = vadd.f32 %v808, %v834
        %v852 = vadd.f32 %v809, %v838
        %v853 = vadd.f32 %v810, %v834
        %v854 = vadd.f32 %v811, %v838
        %v855 = vadd.f32 %v812, %v834
        %v856 = vadd.f32 %v813, %v838
        %v857 = vadd.f32 %v814, %v834
        %v858 = vadd.f32 %v815, %v838
        %v859 = vadd.f32 %v816, %v834
        %v860 = vadd.f32 %v817, %v838
        %v861 = vadd.f32 %v818, %v834
        %v862 = vadd.f32 %v819, %v838
        %v863 = vadd.f32 %v820, %v834
        %v864 = vadd.f32 %v821, %v838
        %v865 = vadd.f32 %v822, %v834
        %v866 = vadd.f32 %v823, %v838
        %v867 = vadd.f32 %v824, %v834
        %v868 = vadd.f32 %v825, %v838
        %v869 = vadd.f32 %v826, %v834
        %v870 = vadd.f32 %v827, %v838
        %v871 = vadd.f32 %v828, %v834
        %v872 = vadd.f32 %v829, %v838
        %873 = vst [vmem:[%s284] sm:$0xff] %v841
        %874 = vst [vmem:[%s284 + $0x8] sm:$0xff] %v842
        %875 = vst [vmem:[%s284 + $0x10] sm:$0xff] %v843
        %876 = vst [vmem:[%s284 + $0x18] sm:$0xff] %v844
        %877 = vst [vmem:[%s284 + $0x20] sm:$0xff] %v845
        %878 = vst [vmem:[%s284 + $0x28] sm:$0xff] %v846
        %879 = vst [vmem:[%s284 + $0x30] sm:$0xff] %v847
        %880 = vst [vmem:[%s284 + $0x38] sm:$0xff] %v848
        %881 = vst [vmem:[%s284 + $0x40] sm:$0xff] %v849
        %882 = vst [vmem:[%s284 + $0x48] sm:$0xff] %v850
        %883 = vst [vmem:[%s284 + $0x50] sm:$0xff] %v851
        %884 = vst [vmem:[%s284 + $0x58] sm:$0xff] %v852
        %885 = vst [vmem:[%s284 + $0x60] sm:$0xff] %v853
        %886 = vst [vmem:[%s284 + $0x68] sm:$0xff] %v854
        %887 = vst [vmem:[%s284 + $0x70] sm:$0xff] %v855
        %888 = vst [vmem:[%s284 + $0x78] sm:$0xff] %v856
        %889 = vst [vmem:[%s284 + $0x80] sm:$0xff] %v857
        %890 = vst [vmem:[%s284 + $0x88] sm:$0xff] %v858
        %891 = vst [vmem:[%s284 + $0x90] sm:$0xff] %v859
        %892 = vst [vmem:[%s284 + $0x98] sm:$0xff] %v860
        %893 = vst [vmem:[%s284 + $0xa0] sm:$0xff] %v861
        %894 = vst [vmem:[%s284 + $0xa8] sm:$0xff] %v862
        %895 = vst [vmem:[%s284 + $0xb0] sm:$0xff] %v863
        %896 = vst [vmem:[%s284 + $0xb8] sm:$0xff] %v864
        %897 = vst [vmem:[%s284 + $0xc0] sm:$0xff] %v865
        %898 = vst [vmem:[%s284 + $0xc8] sm:$0xff] %v866
        %899 = vst [vmem:[%s284 + $0xd0] sm:$0xff] %v867
        %900 = vst [vmem:[%s284 + $0xd8] sm:$0xff] %v868
        %901 = vst [vmem:[%s284 + $0xe0] sm:$0xff] %v869
        %902 = vst [vmem:[%s284 + $0xe8] sm:$0xff] %v870
        %903 = vst [vmem:[%s284 + $0xf0] sm:$0xff] %v871
        %904 = vst [vmem:[%s284 + $0xf8] sm:$0xff] %v872
        %s905 = sand.u32 %s155, 1
        %s906 = scalar_lea.sflag [#allocation4], %s905
        %s907 = sand.u32 %s155, 1
        %s908 = smul.addr %s907, 256
        %s909 = scalar_lea.vmem [#allocation5], %s908
        // Predicated region
        $region45: #{tpu_custom_call.1} parent=39 // pred_check
          %p910 = pneg %p165
        $region46: #{tpu_custom_call.1} parent=39 // pred_check_branch
          %912 = sbr.rel (%p910) target = $region48
        $region47: #{tpu_custom_call.1} parent=39 // pred_region
          %s913 = smul.u32 2, %s22
          %s915 = ssub.s32 4096, 4096
          %916 = vsyncadd %s906, %s915
          %s917 = smul.addr %s913, 128
          %s918 = scalar_lea.hbm %s5, %s917
          %s919 = sshll.u32 %s909, 4
          %s920 = int_to_ptr.vmem [resolvable:$true] %s919
          %925 = dma.vmem_to_hbm [thread:$0]  %s920, 4096, %s918, %s906, 256, 512, 16
        $region48: #{tpu_custom_call.1} parent=39 // pred_fallthru
          _
      $region40: #{tpu_custom_call.1} parent=5 // pred_fallthru
        _
      %p926 = scmp.le.s32.totalorder 2, %s17
      // Predicated region
      $region49: #{tpu_custom_call.1} parent=5 // pred_check
        %p927 = pneg %p926
      $region50: #{tpu_custom_call.1} parent=5 // pred_check_branch
        %929 = sbr.rel (%p927) target = $region52
      $region51: #{tpu_custom_call.1} parent=5 // pred_region
        %s930 = ssub.s32 %s17, 2
        // Predicated region
        $region53: #{tpu_custom_call.1} parent=51 // pred_check
          %p931 = pneg %p171
        $region54: #{tpu_custom_call.1} parent=51 // pred_check_branch
          %933 = sbr.rel (%p931) target = $region56
        $region55: #{tpu_custom_call.1} parent=51 // pred_region
          %s934 = sand.u32 %s156, 1
          %s935 = scalar_lea.sflag [#allocation4], %s934
          %s936 = sand.u32 %s156, 1
          %s937 = smul.addr %s936, 256
          %s938 = scalar_lea.vmem [#allocation5], %s937
          %939 = dma.done %s935, 4096
        $region56: #{tpu_custom_call.1} parent=51 // pred_fallthru
          _
      $region52: #{tpu_custom_call.1} parent=5 // pred_fallthru
        _
    $region6: #{tpu_custom_call.1} parent=1 // loop_footer
      %s21 = sadd.s32 1, %s17
    $region7: #{tpu_custom_call.1} parent=1 // loop_footer_branch
      %16 = sbr.rel target = $region3
    $region8: #{tpu_custom_call.1} parent=1 // loop_exit
      _
    %940 = vsyncpa [#allocation3], 1
    %s941 = scalar_lea.sflag [#allocation3], 1
    %942 = vsyncpa %s941, 1
    %943 = vsyncpa [#allocation4], 1
    %s944 = scalar_lea.sflag [#allocation4], 1
    %945 = vsyncpa %s944, 1

</llo_original>
